<compile_context>
chip_gen: v7x
topology: tpu7x:2x2x1
jax: 0.10.0
libtpu: 0.0.40
codegen_flags: <defaults>
</compile_context>

<pallas_src>
import functools

import jax
import jax.numpy as jnp
from jax.experimental import pallas as pl
from jax.experimental.pallas import tpu as pltpu

EPS = 1e-5      # nn.BatchNorm1d default eps
LANES = 128     # TPU lane width; every feature dim is zero-padded to this


# ---------------------------------------------------------------------------
# kernel
# ---------------------------------------------------------------------------
def _ae_kernel(x_ref, w_ref, p_ref, out_ref):
    """Single-block AE forward.

    x_ref  : [N, 128] bf16    input, real features in lanes [:D], zeros elsewhere
    w_ref  : [4, 128, 128] bf16  zero-padded transposed weights ([in, out] layout)
    p_ref  : [8, 128] f32     rows: g1, be1, g2, be2, g3, be3, b4, 0-pad
    out_ref: [N, 256] f32     recon (padded) in lanes 0:128, z (padded) in 128:256
    """
    x = x_ref[...]
    p = p_ref[...]                      # whole param slab (1 vreg), loaded once
    inv_n = jnp.float32(1.0 / x.shape[0])

    # parameter rows (static sublane slices of the in-register slab)
    g1, be1 = p[0:1, :], p[1:2, :]
    g2, be2 = p[2:3, :], p[3:4, :]
    g3, be3 = p[4:5, :], p[5:6, :]
    b4 = p[6:7, :]

    def matmul(h, w_idx):
        # [N,128] @ [128,128] on the MXU, bf16 operands, f32 accumulate.
        # Padding rows/cols of W are zero, so padding lanes stay exactly zero.
        # Linear bias is omitted for the three BN'd layers: training-mode BN
        # subtracts the batch mean, so the bias cancels exactly.
        return jnp.dot(h.astype(jnp.bfloat16), w_ref[w_idx],
                       preferred_element_type=jnp.float32)

    def bn_relu(h, gamma_row, beta_row):
        # BatchNorm1d training-mode batch stats, single pass + folded scale/shift.
        # All stat / elementwise math stays in f32 (no bf16 VPU/EUP on v5e).
        mean = jnp.sum(h, axis=0, keepdims=True) * inv_n
        meansq = jnp.sum(h * h, axis=0, keepdims=True) * inv_n
        var = meansq - mean * mean
        scale = gamma_row * jax.lax.rsqrt(var + EPS)      # EUP rsqrt (free slot)
        shift = beta_row - mean * scale
        # padding lanes: gamma=beta=0 -> scale=shift=0 -> output stays 0
        return jnp.maximum(h * scale + shift, 0.0)

    # ---- encoder ----
    h = bn_relu(matmul(x, 0), g1, be1)          # D  -> H1
    z = bn_relu(matmul(h, 1), g2, be2)          # H1 -> H2
    # store z immediately: shortens its live range across the decoder matmuls
    out_ref[:, LANES:] = z.astype(out_ref.dtype)
    # ---- decoder ----
    h = bn_relu(matmul(z, 2), g3, be3)          # H2 -> H1
    recon = matmul(h, 3) + b4                   # H1 -> D (bias kept: no BN here)
    out_ref[:, :LANES] = recon.astype(out_ref.dtype)


# ---------------------------------------------------------------------------
# packing (runs ONCE at init) + wrapper (jit'ed per-call path)
# ---------------------------------------------------------------------------
def _pad_lanes(a, width=LANES):
    return jnp.pad(a, ((0, 0), (0, width - a.shape[-1])))


def pack_params(params):
    """Pack the per-layer tensors into 2 lane-dense slabs for the kernel.

    Called once at init (hoisted out of the per-forward path).
    Biases of the BN'd layers (b1,b2,b3) are dropped: they cancel under
    training-mode BatchNorm.
    """
    (w1, _b1, g1, be1, w2, _b2, g2, be2, w3, _b3, g3, be3, w4, b4) = params

    def pad_w(wt):  # [in, out] -> [128, 128] bf16, zero padded
        din, dout = wt.shape
        return jnp.pad(wt, ((0, LANES - din), (0, LANES - dout))).astype(jnp.bfloat16)

    w_slab = jnp.stack([pad_w(w1), pad_w(w2), pad_w(w3), pad_w(w4)])   # [4,128,128] bf16

    rows = [g1, be1, g2, be2, g3, be3, b4]                             # seven [1,out]
    p_rows = jnp.concatenate([_pad_lanes(r) for r in rows], axis=0)    # [7,128]
    p_slab = jnp.pad(p_rows, ((0, 8 - p_rows.shape[0]), (0, 0)))       # [8,128] f32
    return w_slab, p_slab


def _vmem_limit_bytes(n_rows):
    """Scoped-VMEM request sized to the actual buffers (safe on v7x's 64 MiB)."""
    x_bytes = n_rows * LANES * 2                 # bf16 input
    out_bytes = n_rows * 2 * LANES * 4           # f32 packed output
    w_bytes = 4 * LANES * LANES * 2              # bf16 weight slab
    p_bytes = 8 * LANES * 4                      # f32 param slab
    act_bytes = 4 * n_rows * LANES * 4           # f32 intermediate headroom
    need = 2 * (x_bytes + out_bytes + w_bytes + p_bytes) + act_bytes
    return int(min(max(need, 4 << 20), 48 << 20))


@functools.partial(jax.jit, static_argnames=("input_dim", "latent_dim"))
def ae_forward(x, w_slab, p_slab, *, input_dim, latent_dim):
    """x: [N, D] float32. w_slab/p_slab: outputs of pack_params (hoisted)."""
    N, D = x.shape
    assert D == input_dim and D <= LANES and latent_dim <= LANES

    # Pad + cast fuse with the pallas_call under jit (no extra HBM round trips).
    x_pad = _pad_lanes(x).astype(jnp.bfloat16)   # [N, 128], zeros beyond D

    def full_spec(shape):
        return pl.BlockSpec(shape, lambda: (0,) * len(shape))

    packed = pl.pallas_call(
        _ae_kernel,
        grid=(),
        in_specs=[full_spec(x_pad.shape),
                  full_spec(w_slab.shape),
                  full_spec(p_slab.shape)],
        out_specs=full_spec((N, 2 * LANES)),
        out_shape=jax.ShapeDtypeStruct((N, 2 * LANES), jnp.float32),
        compiler_params=pltpu.CompilerParams(vmem_limit_bytes=_vmem_limit_bytes(N)),
    )(x_pad, w_slab, p_slab)

    recon = packed[:, :input_dim]
    z = packed[:, LANES:LANES + latent_dim]
    return recon, z


# ---------------------------------------------------------------------------
# parameter init (mirrors the torch module layer structure) + references
# ---------------------------------------------------------------------------
def init_params(key, input_dim, layer_sizes):
    """Weights returned pre-transposed [in, out]; biases / BN params as [1, out]."""
    H1, H2 = layer_sizes
    dims = [
        (input_dim, H1),   # encoder Linear 1 (+ BN)
        (H1, H2),          # encoder Linear 2 (+ BN)
        (H2, H1),          # decoder Linear 1 (+ BN)
        (H1, input_dim),   # decoder output Linear (no BN)
    ]
    params = []
    keys = jax.random.split(key, len(dims) * 2)
    for i, (din, dout) in enumerate(dims):
        bound = 1.0 / jnp.sqrt(din)
        wt = jax.random.uniform(keys[2 * i], (din, dout), jnp.float32, -bound, bound)
        b = jax.random.uniform(keys[2 * i + 1], (1, dout), jnp.float32, -bound, bound)
        params.extend([wt, b])
        if i < 3:  # BN follows the first three linears
            params.extend([jnp.ones((1, dout), jnp.float32),    # gamma
                           jnp.zeros((1, dout), jnp.float32)])  # beta
    return params


def ae_reference_f32(x, params):
    """Pure-f32 PyTorch-semantics reference (Linear + training-mode BN + ReLU)."""
    (w1, b1, g1, be1, w2, b2, g2, be2, w3, b3, g3, be3, w4, b4) = params

    def lin(h, wt, b):
        return h @ wt + b

    def bn(h, g, be):
        m = jnp.mean(h, axis=0, keepdims=True)
        v = jnp.mean((h - m) ** 2, axis=0, keepdims=True)
        return g * (h - m) / jnp.sqrt(v + EPS) + be

    h = jnp.maximum(bn(lin(x, w1, b1), g1, be1), 0.0)
    z = jnp.maximum(bn(lin(h, w2, b2), g2, be2), 0.0)
    h = jnp.maximum(bn(lin(z, w3, b3), g3, be3), 0.0)
    recon = lin(h, w4, b4)
    return recon, z


def ae_reference_mixed(x, params):
    """Reference matching the kernel's numerics exactly: bf16 MXU operands,
    f32 accumulation, folded single-pass BN, biases of BN'd layers cancelled."""
    (w1, _b1, g1, be1, w2, _b2, g2, be2, w3, _b3, g3, be3, w4, b4) = params

    def mm(h, wt):
        return jnp.dot(h.astype(jnp.bfloat16), wt.astype(jnp.bfloat16),
                       preferred_element_type=jnp.float32)

    def bn_relu(h, g, be):
        inv_n = jnp.float32(1.0 / h.shape[0])
        mean = jnp.sum(h, axis=0, keepdims=True) * inv_n
        meansq = jnp.sum(h * h, axis=0, keepdims=True) * inv_n
        var = meansq - mean * mean
        scale = g * jax.lax.rsqrt(var + EPS)
        shift = be - mean * scale
        return jnp.maximum(h * scale + shift, 0.0)

    h = bn_relu(mm(x, w1), g1, be1)
    z = bn_relu(mm(h, w2), g2, be2)
    h = bn_relu(mm(z, w3), g3, be3)
    recon = mm(h, w4) + b4
    return recon, z


if __name__ == "__main__":
    # AE(input_dim=64, layer_sizes="[32, 16]", enc_type='linear', dropout=0.0)
    input_dim = 64
    layer_sizes = [32, 16]
    N = 32  # batch

    key = jax.random.PRNGKey(0)
    kx, kp = jax.random.split(key)
    x = jax.random.normal(kx, (N, input_dim), jnp.float32)
    params = init_params(kp, input_dim, layer_sizes)

    # Packing hoisted out of the per-call path (runs once).
    w_slab, p_slab = pack_params(params)

    recon, z = ae_forward(x, w_slab, p_slab,
                          input_dim=input_dim, latent_dim=layer_sizes[-1])
    jax.block_until_ready((recon, z))

    assert recon.shape == (N, input_dim) and z.shape == (N, layer_sizes[-1])

    # Kernel-correctness gate: tight check against a numerics-matched reference.
    recon_m, z_m = ae_reference_mixed(x, params)
    assert jnp.allclose(recon, recon_m, atol=5e-3, rtol=5e-3)
    assert jnp.allclose(z, z_m, atol=5e-3, rtol=5e-3)

    # Semantic sanity check against the pure-f32 PyTorch-style reference
    # (looser tolerance: bf16 MXU operands bound the achievable precision).
    recon_f, z_f = ae_reference_f32(x, params)
    assert jnp.allclose(recon, recon_f, atol=1e-1, rtol=1e-1)
    assert jnp.allclose(z, z_f, atol=1e-1, rtol=1e-1)

    print("KERNEL_OK")
</pallas_src>

<mosaic_0001>
module attributes {stable_mosaic.version = 11 : i64} {
  func.func @_ae_kernel(%arg0: memref<32x128xbf16, #tpu.memory_space<vmem>>, %arg1: memref<4x128x128xbf16, #tpu.memory_space<vmem>>, %arg2: memref<8x128xf32, #tpu.memory_space<vmem>>, %arg3: memref<32x256xf32, #tpu.memory_space<vmem>>) attributes {dimension_semantics = [], scalar_prefetch = 0 : i64, scratch_operands = 0 : i64, tpu.core_type = #tpu.core_type<tc>} {
    %c0 = arith.constant 0 : index
    %c0_0 = arith.constant 0 : index
    %0 = vector.load %arg0[%c0, %c0_0] : memref<32x128xbf16, #tpu.memory_space<vmem>>, vector<32x128xbf16>
    %c0_1 = arith.constant 0 : index
    %c0_2 = arith.constant 0 : index
    %1 = vector.load %arg2[%c0_1, %c0_2] : memref<8x128xf32, #tpu.memory_space<vmem>>, vector<8x128xf32>
    %2 = vector.extract_strided_slice %1 {offsets = [0, 0], sizes = [1, 128], strides = [1, 1]} : vector<8x128xf32> to vector<1x128xf32>
    %3 = vector.extract_strided_slice %1 {offsets = [1, 0], sizes = [1, 128], strides = [1, 1]} : vector<8x128xf32> to vector<1x128xf32>
    %4 = vector.extract_strided_slice %1 {offsets = [2, 0], sizes = [1, 128], strides = [1, 1]} : vector<8x128xf32> to vector<1x128xf32>
    %5 = vector.extract_strided_slice %1 {offsets = [3, 0], sizes = [1, 128], strides = [1, 1]} : vector<8x128xf32> to vector<1x128xf32>
    %6 = vector.extract_strided_slice %1 {offsets = [4, 0], sizes = [1, 128], strides = [1, 1]} : vector<8x128xf32> to vector<1x128xf32>
    %7 = vector.extract_strided_slice %1 {offsets = [5, 0], sizes = [1, 128], strides = [1, 1]} : vector<8x128xf32> to vector<1x128xf32>
    %8 = vector.extract_strided_slice %1 {offsets = [6, 0], sizes = [1, 128], strides = [1, 1]} : vector<8x128xf32> to vector<1x128xf32>
    %c0_3 = arith.constant 0 : index
    %c0_4 = arith.constant 0 : index
    %c0_5 = arith.constant 0 : index
    %9 = vector.load %arg1[%c0_3, %c0_4, %c0_5] : memref<4x128x128xbf16, #tpu.memory_space<vmem>>, vector<1x128x128xbf16>
    %10 = vector.shape_cast %9 : vector<1x128x128xbf16> to vector<128x128xbf16>
    %cst = arith.constant dense<0.000000e+00> : vector<32x128xf32>
    %11 = tpu.matmul %0, %10, %cst {dimension_numbers = #tpu.dot_dimension_numbers<[1], [0], [0], [1], [0, 0, 1, 1], [], []>} : vector<32x128xbf16>, vector<128x128xbf16>, vector<32x128xf32> -> vector<32x128xf32>
    %cst_6 = arith.constant dense<0.000000e+00> : vector<128xf32>
    %12 = vector.multi_reduction <add>, %11, %cst_6 [0] : vector<32x128xf32> to vector<128xf32>
    %13 = vector.shape_cast %12 : vector<128xf32> to vector<1x128xf32>
    %cst_7 = arith.constant 3.125000e-02 : f32
    %14 = vector.broadcast %cst_7 : f32 to vector<1x128xf32>
    %15 = arith.mulf %13, %14 : vector<1x128xf32>
    %16 = arith.mulf %11, %11 : vector<32x128xf32>
    %cst_8 = arith.constant dense<0.000000e+00> : vector<128xf32>
    %17 = vector.multi_reduction <add>, %16, %cst_8 [0] : vector<32x128xf32> to vector<128xf32>
    %18 = vector.shape_cast %17 : vector<128xf32> to vector<1x128xf32>
    %cst_9 = arith.constant 3.125000e-02 : f32
    %19 = vector.broadcast %cst_9 : f32 to vector<1x128xf32>
    %20 = arith.mulf %18, %19 : vector<1x128xf32>
    %21 = arith.mulf %15, %15 : vector<1x128xf32>
    %22 = arith.subf %20, %21 : vector<1x128xf32>
    %cst_10 = arith.constant 9.99999974E-6 : f32
    %23 = vector.broadcast %cst_10 : f32 to vector<1x128xf32>
    %24 = arith.addf %22, %23 : vector<1x128xf32>
    %25 = math.rsqrt %24 : vector<1x128xf32>
    %26 = arith.mulf %2, %25 : vector<1x128xf32>
    %27 = arith.mulf %15, %26 : vector<1x128xf32>
    %28 = arith.subf %3, %27 : vector<1x128xf32>
    %29 = vector.broadcast %26 : vector<1x128xf32> to vector<32x128xf32>
    %30 = arith.mulf %11, %29 : vector<32x128xf32>
    %31 = vector.broadcast %28 : vector<1x128xf32> to vector<32x128xf32>
    %32 = arith.addf %30, %31 : vector<32x128xf32>
    %cst_11 = arith.constant 0.000000e+00 : f32
    %33 = vector.broadcast %cst_11 : f32 to vector<32x128xf32>
    %34 = arith.maximumf %32, %33 : vector<32x128xf32>
    %35 = arith.truncf %34 : vector<32x128xf32> to vector<32x128xbf16>
    %c1 = arith.constant 1 : index
    %c0_12 = arith.constant 0 : index
    %c0_13 = arith.constant 0 : index
    %36 = vector.load %arg1[%c1, %c0_12, %c0_13] : memref<4x128x128xbf16, #tpu.memory_space<vmem>>, vector<1x128x128xbf16>
    %37 = vector.shape_cast %36 : vector<1x128x128xbf16> to vector<128x128xbf16>
    %cst_14 = arith.constant dense<0.000000e+00> : vector<32x128xf32>
    %38 = tpu.matmul %35, %37, %cst_14 {dimension_numbers = #tpu.dot_dimension_numbers<[1], [0], [0], [1], [0, 0, 1, 1], [], []>} : vector<32x128xbf16>, vector<128x128xbf16>, vector<32x128xf32> -> vector<32x128xf32>
    %cst_15 = arith.constant dense<0.000000e+00> : vector<128xf32>
    %39 = vector.multi_reduction <add>, %38, %cst_15 [0] : vector<32x128xf32> to vector<128xf32>
    %40 = vector.shape_cast %39 : vector<128xf32> to vector<1x128xf32>
    %cst_16 = arith.constant 3.125000e-02 : f32
    %41 = vector.broadcast %cst_16 : f32 to vector<1x128xf32>
    %42 = arith.mulf %40, %41 : vector<1x128xf32>
    %43 = arith.mulf %38, %38 : vector<32x128xf32>
    %cst_17 = arith.constant dense<0.000000e+00> : vector<128xf32>
    %44 = vector.multi_reduction <add>, %43, %cst_17 [0] : vector<32x128xf32> to vector<128xf32>
    %45 = vector.shape_cast %44 : vector<128xf32> to vector<1x128xf32>
    %cst_18 = arith.constant 3.125000e-02 : f32
    %46 = vector.broadcast %cst_18 : f32 to vector<1x128xf32>
    %47 = arith.mulf %45, %46 : vector<1x128xf32>
    %48 = arith.mulf %42, %42 : vector<1x128xf32>
    %49 = arith.subf %47, %48 : vector<1x128xf32>
    %cst_19 = arith.constant 9.99999974E-6 : f32
    %50 = vector.broadcast %cst_19 : f32 to vector<1x128xf32>
    %51 = arith.addf %49, %50 : vector<1x128xf32>
    %52 = math.rsqrt %51 : vector<1x128xf32>
    %53 = arith.mulf %4, %52 : vector<1x128xf32>
    %54 = arith.mulf %42, %53 : vector<1x128xf32>
    %55 = arith.subf %5, %54 : vector<1x128xf32>
    %56 = vector.broadcast %53 : vector<1x128xf32> to vector<32x128xf32>
    %57 = arith.mulf %38, %56 : vector<32x128xf32>
    %58 = vector.broadcast %55 : vector<1x128xf32> to vector<32x128xf32>
    %59 = arith.addf %57, %58 : vector<32x128xf32>
    %cst_20 = arith.constant 0.000000e+00 : f32
    %60 = vector.broadcast %cst_20 : f32 to vector<32x128xf32>
    %61 = arith.maximumf %59, %60 : vector<32x128xf32>
    %c0_21 = arith.constant 0 : index
    %c128 = arith.constant 128 : index
    %62 = vector.load %arg3[%c0_21, %c128] : memref<32x256xf32, #tpu.memory_space<vmem>>, vector<32x128xf32>
    tpu.vector_store %arg3[%c0_21, %c128], %61 {strides = array<i32>} : memref<32x256xf32, #tpu.memory_space<vmem>>, vector<32x128xf32>,
    %63 = arith.truncf %61 : vector<32x128xf32> to vector<32x128xbf16>
    %c2 = arith.constant 2 : index
    %c0_22 = arith.constant 0 : index
    %c0_23 = arith.constant 0 : index
    %64 = vector.load %arg1[%c2, %c0_22, %c0_23] : memref<4x128x128xbf16, #tpu.memory_space<vmem>>, vector<1x128x128xbf16>
    %65 = vector.shape_cast %64 : vector<1x128x128xbf16> to vector<128x128xbf16>
    %cst_24 = arith.constant dense<0.000000e+00> : vector<32x128xf32>
    %66 = tpu.matmul %63, %65, %cst_24 {dimension_numbers = #tpu.dot_dimension_numbers<[1], [0], [0], [1], [0, 0, 1, 1], [], []>} : vector<32x128xbf16>, vector<128x128xbf16>, vector<32x128xf32> -> vector<32x128xf32>
    %cst_25 = arith.constant dense<0.000000e+00> : vector<128xf32>
    %67 = vector.multi_reduction <add>, %66, %cst_25 [0] : vector<32x128xf32> to vector<128xf32>
    %68 = vector.shape_cast %67 : vector<128xf32> to vector<1x128xf32>
    %cst_26 = arith.constant 3.125000e-02 : f32
    %69 = vector.broadcast %cst_26 : f32 to vector<1x128xf32>
    %70 = arith.mulf %68, %69 : vector<1x128xf32>
    %71 = arith.mulf %66, %66 : vector<32x128xf32>
    %cst_27 = arith.constant dense<0.000000e+00> : vector<128xf32>
    %72 = vector.multi_reduction <add>, %71, %cst_27 [0] : vector<32x128xf32> to vector<128xf32>
    %73 = vector.shape_cast %72 : vector<128xf32> to vector<1x128xf32>
    %cst_28 = arith.constant 3.125000e-02 : f32
    %74 = vector.broadcast %cst_28 : f32 to vector<1x128xf32>
    %75 = arith.mulf %73, %74 : vector<1x128xf32>
    %76 = arith.mulf %70, %70 : vector<1x128xf32>
    %77 = arith.subf %75, %76 : vector<1x128xf32>
    %cst_29 = arith.constant 9.99999974E-6 : f32
    %78 = vector.broadcast %cst_29 : f32 to vector<1x128xf32>
    %79 = arith.addf %77, %78 : vector<1x128xf32>
    %80 = math.rsqrt %79 : vector<1x128xf32>
    %81 = arith.mulf %6, %80 : vector<1x128xf32>
    %82 = arith.mulf %70, %81 : vector<1x128xf32>
    %83 = arith.subf %7, %82 : vector<1x128xf32>
    %84 = vector.broadcast %81 : vector<1x128xf32> to vector<32x128xf32>
    %85 = arith.mulf %66, %84 : vector<32x128xf32>
    %86 = vector.broadcast %83 : vector<1x128xf32> to vector<32x128xf32>
    %87 = arith.addf %85, %86 : vector<32x128xf32>
    %cst_30 = arith.constant 0.000000e+00 : f32
    %88 = vector.broadcast %cst_30 : f32 to vector<32x128xf32>
    %89 = arith.maximumf %87, %88 : vector<32x128xf32>
    %90 = arith.truncf %89 : vector<32x128xf32> to vector<32x128xbf16>
    %c3 = arith.constant 3 : index
    %c0_31 = arith.constant 0 : index
    %c0_32 = arith.constant 0 : index
    %91 = vector.load %arg1[%c3, %c0_31, %c0_32] : memref<4x128x128xbf16, #tpu.memory_space<vmem>>, vector<1x128x128xbf16>
    %92 = vector.shape_cast %91 : vector<1x128x128xbf16> to vector<128x128xbf16>
    %cst_33 = arith.constant dense<0.000000e+00> : vector<32x128xf32>
    %93 = tpu.matmul %90, %92, %cst_33 {dimension_numbers = #tpu.dot_dimension_numbers<[1], [0], [0], [1], [0, 0, 1, 1], [], []>} : vector<32x128xbf16>, vector<128x128xbf16>, vector<32x128xf32> -> vector<32x128xf32>
    %94 = vector.broadcast %8 : vector<1x128xf32> to vector<32x128xf32>
    %95 = arith.addf %93, %94 : vector<32x128xf32>
    %c0_34 = arith.constant 0 : index
    %c0_35 = arith.constant 0 : index
    %96 = vector.load %arg3[%c0_34, %c0_35] : memref<32x256xf32, #tpu.memory_space<vmem>>, vector<32x128xf32>
    tpu.vector_store %arg3[%c0_34, %c0_35], %95 {strides = array<i32>} : memref<32x256xf32, #tpu.memory_space<vmem>>, vector<32x128xf32>,
    return
  }
}

</mosaic_0001>

<llo_original>
// kernel: ae_forward.1
$region0: #{ae_forward.1}
  #allocation0 [shape = 'u32[]', space=smem, size = 0x4, offset = 0x4, fixed_abs, tag = 'smem constant byte address 0x4 - core index']
  #allocation1 [shape = 'u32[144,128]{1,0:T(1,128)}', space=vmem, size = 0x12000, scoped, tag = 'internal scratch']
  %s0 = inlined_call_operand.vmem [shape: bf16[32,128], index: 0, kind: input, shape index: {}]
  %s1 = inlined_call_operand.hbm [shape: bf16[4,128,128], index: 1, kind: input, shape index: {}]
  %s2 = inlined_call_operand.vmem [shape: f32[8,128], index: 2, kind: input, shape index: {}]
  %s3 = inlined_call_operand.vmem [shape: f32[32,256], index: 3, kind: output, shape index: {}]
  %s4 = sld [smem:[#allocation0]]
  $region26: #{ae_forward.1} parent=0
    _
  %s6 = ssub.s32 1, %s4
  %s7 = scalar_select 0, %s6, %s4
  $region1: #{ae_forward.1} parent=0
    #allocation2 [shape = 'u8[131072]{0}', space=vmem, size = 0x20000, scoped, tag = 'input window, operand 1, single buffered']
    #allocation3 [shape = 's32[1]{0}', space=sflag, size = 0x4, scoped, tag = 'scoped memory for ae_forward.1']
    %8 = vsyncpa [#allocation3], 0
    // Predicated region
    $region2: #{ae_forward.1} parent=1 // pred_check
      _
    $region3: #{ae_forward.1} parent=1 // pred_check_branch
      %10 = sbr.rel (0) target = $region5
    $region4: #{ae_forward.1} parent=1 // pred_region
      _
    $region5: #{ae_forward.1} parent=1 // pred_fallthru
      _
    // Predicated region
    $region6: #{ae_forward.1} parent=1 // pred_check
      _
    $region7: #{ae_forward.1} parent=1 // pred_check_branch
      %12 = sbr.rel (0) target = $region9
    $region8: #{ae_forward.1} parent=1 // pred_region
      %s14 = ssub.s32 4096, 4096
      %15 = vsyncadd [#allocation3], %s14
      %s16 = sshll.u32 [#allocation2], 4
      %s17 = int_to_ptr.vmem [resolvable:$true] %s16
      %22 = dma.hbm_to_vmem [thread:$0]  %s1, 4096, %s17, [#allocation3], 64, 64, 4
    $region9: #{ae_forward.1} parent=1 // pred_fallthru
      _
    // Predicated region
    $region10: #{ae_forward.1} parent=1 // pred_check
      _
    $region11: #{ae_forward.1} parent=1 // pred_check_branch
      %24 = sbr.rel (0) target = $region13
    $region12: #{ae_forward.1} parent=1 // pred_region
      _
    $region13: #{ae_forward.1} parent=1 // pred_fallthru
      _
    // Predicated region
    $region14: #{ae_forward.1} parent=1 // pred_check
      _
    $region15: #{ae_forward.1} parent=1 // pred_check_branch
      %26 = sbr.rel (0) target = $region17
    $region16: #{ae_forward.1} parent=1 // pred_region
      %27 = dma.done [#allocation3], 4096
    $region17: #{ae_forward.1} parent=1 // pred_fallthru
      _
    %v29 = vld [vmem:[%s0] sm:$0xf]
    %v30 = vld [vmem:[%s0 + $0x4] sm:$0xf]
    %v31 = vld [vmem:[%s0 + $0x8] sm:$0xf]
    %v32 = vld [vmem:[%s0 + $0xc] sm:$0xf]
    %v33 = vld [vmem:[%s2] sm:$0xff]
    %v34 = vld [vmem:[#allocation2] sm:$0xf]
    %v35 = vld [vmem:[#allocation2 + $0x4] sm:$0xf]
    %v36 = vld [vmem:[#allocation2 + $0x8] sm:$0xf]
    %v37 = vld [vmem:[#allocation2 + $0xc] sm:$0xf]
    %v38 = vld [vmem:[#allocation2 + $0x10] sm:$0xf]
    %v39 = vld [vmem:[#allocation2 + $0x14] sm:$0xf]
    %v40 = vld [vmem:[#allocation2 + $0x18] sm:$0xf]
    %v41 = vld [vmem:[#allocation2 + $0x1c] sm:$0xf]
    %v42 = vld [vmem:[#allocation2 + $0x20] sm:$0xf]
    %v43 = vld [vmem:[#allocation2 + $0x24] sm:$0xf]
    %v44 = vld [vmem:[#allocation2 + $0x28] sm:$0xf]
    %v45 = vld [vmem:[#allocation2 + $0x2c] sm:$0xf]
    %v46 = vld [vmem:[#allocation2 + $0x30] sm:$0xf]
    %v47 = vld [vmem:[#allocation2 + $0x34] sm:$0xf]
    %v48 = vld [vmem:[#allocation2 + $0x38] sm:$0xf]
    %v49 = vld [vmem:[#allocation2 + $0x3c] sm:$0xf]
    %v54 = vunpack.c.l.b16 %v29
    %v55 = vunpack.c.l.b16 %v30
    %v56 = vunpack.c.l.b16 %v31
    %v57 = vunpack.c.l.b16 %v32
    %v58 = vpack.c.b16 %v55, %v54
    %v59 = vpack.c.b16 %v57, %v56
    %v78 = vunpack.c.l.b16 %v34
    %v79 = vunpack.c.l.b16 %v35
    %v80 = vunpack.c.l.b16 %v36
    %v81 = vunpack.c.l.b16 %v37
    %v82 = vunpack.c.l.b16 %v38
    %v83 = vunpack.c.l.b16 %v39
    %v84 = vunpack.c.l.b16 %v40
    %v85 = vunpack.c.l.b16 %v41
    %v86 = vunpack.c.l.b16 %v42
    %v87 = vunpack.c.l.b16 %v43
    %v88 = vunpack.c.l.b16 %v44
    %v89 = vunpack.c.l.b16 %v45
    %v90 = vunpack.c.l.b16 %v46
    %v91 = vunpack.c.l.b16 %v47
    %v92 = vunpack.c.l.b16 %v48
    %v93 = vunpack.c.l.b16 %v49
    %v94 = vpack.c.b16 %v79, %v78
    %v95 = vpack.c.b16 %v81, %v80
    %v96 = vpack.c.b16 %v83, %v82
    %v97 = vpack.c.b16 %v85, %v84
    %v98 = vpack.c.b16 %v87, %v86
    %v99 = vpack.c.b16 %v89, %v88
    %v100 = vpack.c.b16 %v91, %v90
    %v101 = vpack.c.b16 %v93, %v92
    %110 = vmatprep.subr.bf16.mxu0 0
    %111 = vmatpush1.bf16.msra.mxu0 %v94
    %112 = vmatprep.subr.bf16.mxu0 0
    %113 = vmatpush1.bf16.msra.mxu0 %v95
    %114 = vmatprep.subr.bf16.mxu0 0
    %115 = vmatpush1.bf16.msra.mxu0 %v96
    %116 = vmatprep.subr.bf16.mxu0 0
    %117 = vmatpush1.bf16.msra.mxu0 %v97
    %118 = vmatprep.subr.bf16.mxu0 0
    %119 = vmatpush1.bf16.msra.mxu0 %v98
    %120 = vmatprep.subr.bf16.mxu0 0
    %121 = vmatpush1.bf16.msra.mxu0 %v99
    %122 = vmatprep.subr.bf16.mxu0 0
    %123 = vmatpush1.bf16.msra.mxu0 %v100
    %124 = vmatprep.subr.bf16.mxu0 0
    %125 = vmatpush1.bf16.msra.mxu0 %v101
    %126 = vmatprep.subr.bf16.mxu0 0
    %127 = vmatpush1.bf16.msra.mxu0 0
    %128 = vmatprep.subr.bf16.mxu0 0
    %129 = vmatpush1.bf16.msra.mxu0 0
    %130 = vmatprep.subr.bf16.mxu0 0
    %131 = vmatpush1.bf16.msra.mxu0 0
    %132 = vmatprep.subr.bf16.mxu0 0
    %133 = vmatpush1.bf16.msra.mxu0 0
    %134 = vmatprep.subr.bf16.mxu0 0
    %135 = vmatpush1.bf16.msra.mxu0 0
    %136 = vmatprep.subr.bf16.mxu0 0
    %137 = vmatpush1.bf16.msra.mxu0 0
    %138 = vmatprep.subr.bf16.mxu0 0
    %139 = vmatpush1.bf16.msra.mxu0 0
    %140 = vmatprep.subr.bf16.mxu0 0
    %141 = vmatpush1.bf16.msra.mxu0 0
    %142 = vmatprep.mubr.bf16.mxu0 0
    %143 = vmatmul.mubr.bf16.gmra.mrb[0].mxu0 %v58
    %v144 = vpop.f32.mrb[0].mxu0
    %v145 = vadd.f32 0.0, %v144
    %v146 = vpop.f32.mrb[0].mxu0
    %v147 = vpop.f32.mrb[0].mxu0
    %v148 = vadd.f32 0.0, %v147
    %v149 = vpop.f32.mrb[0].mxu0
    %150 = vmatprep.mubr.bf16.mxu0 0
    %151 = vmatmul.mubr.bf16.gmra.mrb[0].mxu0 %v59
    %v152 = vpop.f32.mrb[0].mxu0
    %v153 = vadd.f32 0.0, %v152
    %v154 = vpop.f32.mrb[0].mxu0
    %v155 = vpop.f32.mrb[0].mxu0
    %v156 = vadd.f32 0.0, %v155
    %v157 = vpop.f32.mrb[0].mxu0
    %158 = vdwg.mxu0
    %v159 = vadd.f32 %v145, %v148
    %v160 = vadd.f32 %v159, %v153
    %v161 = vadd.f32 %v160, %v156
    %v162 = vrot.slane %v161, 4
    %v163 = vadd.f32 %v161, %v162
    %v164 = vrot.slane %v163, 2
    %v165 = vadd.f32 %v163, %v164
    %v166 = vrot.slane %v165, 1
    %v167 = vadd.f32 %v165, %v166
    %v168 = vmul.f32 %v167, 0.03125
    %v169 = vmul.f32 %v145, %v145
    %v170 = vmul.f32 %v148, %v148
    %v171 = vmul.f32 %v153, %v153
    %v172 = vmul.f32 %v156, %v156
    %v173 = vadd.f32 %v169, %v170
    %v174 = vadd.f32 %v173, %v171
    %v175 = vadd.f32 %v174, %v172
    %v176 = vrot.slane %v175, 4
    %v177 = vadd.f32 %v175, %v176
    %v178 = vrot.slane %v177, 2
    %v179 = vadd.f32 %v177, %v178
    %v180 = vrot.slane %v179, 1
    %v181 = vadd.f32 %v179, %v180
    %v182 = vmul.f32 %v181, 0.03125
    %v183 = vmul.f32 %v168, %v168
    %v184 = vsub.f32 %v182, %v183
    %v185 = vadd.f32 %v184, 1e-05
    %v186 = vrsqrt.pop %v185
    %v187 = vmul.f32 %v33, %v186
    %v188 = vmul.f32 %v168, %v187
    %v190 = vrot.slane %v188, 7
    %v192 = vsub.f32 %v33, %v190
    %v193 = vlaneseq
    %v194 = vshrl.u32 %v193, 7
    %v195 = vsub.s32 0, %v194
    %v196 = vrot.slane %v187, %v195
    %v197 = vmul.f32 %v145, %v196
    %v198 = vmul.f32 %v148, %v196
    %v199 = vmul.f32 %v153, %v196
    %v200 = vmul.f32 %v156, %v196
    %v201 = vlaneseq
    %v202 = vshrl.u32 %v201, 7
    %v203 = vsub.s32 1, %v202
    %v204 = vrot.slane %v192, %v203
    %v205 = vadd.f32 %v197, %v204
    %v206 = vadd.f32 %v198, %v204
    %v207 = vadd.f32 %v199, %v204
    %v208 = vadd.f32 %v200, %v204
    %v209 = vmax.f32 %v205, 0.0
    %v210 = vmax.f32 %v206, 0.0
    %v211 = vmax.f32 %v207, 0.0
    %v212 = vmax.f32 %v208, 0.0
    %v213 = vpack.c.bf16 %v210, %v209
    %v214 = vpack.c.bf16 %v212, %v211
    %s215 = scalar_lea.vmem [#allocation2], 64
    %v216 = vld [vmem:[%s215] sm:$0xf]
    %v217 = vld [vmem:[%s215 + $0x4] sm:$0xf]
    %v218 = vld [vmem:[%s215 + $0x8] sm:$0xf]
    %v219 = vld [vmem:[%s215 + $0xc] sm:$0xf]
    %v220 = vld [vmem:[%s215 + $0x10] sm:$0xf]
    %v221 = vld [vmem:[%s215 + $0x14] sm:$0xf]
    %v222 = vld [vmem:[%s215 + $0x18] sm:$0xf]
    %v223 = vld [vmem:[%s215 + $0x1c] sm:$0xf]
    %v224 = vld [vmem:[%s215 + $0x20] sm:$0xf]
    %v225 = vld [vmem:[%s215 + $0x24] sm:$0xf]
    %v226 = vld [vmem:[%s215 + $0x28] sm:$0xf]
    %v227 = vld [vmem:[%s215 + $0x2c] sm:$0xf]
    %v228 = vld [vmem:[%s215 + $0x30] sm:$0xf]
    %v229 = vld [vmem:[%s215 + $0x34] sm:$0xf]
    %v230 = vld [vmem:[%s215 + $0x38] sm:$0xf]
    %v231 = vld [vmem:[%s215 + $0x3c] sm:$0xf]
    %v248 = vunpack.c.l.b16 %v216
    %v249 = vunpack.c.l.b16 %v217
    %v250 = vunpack.c.l.b16 %v218
    %v251 = vunpack.c.l.b16 %v219
    %v252 = vunpack.c.l.b16 %v220
    %v253 = vunpack.c.l.b16 %v221
    %v254 = vunpack.c.l.b16 %v222
    %v255 = vunpack.c.l.b16 %v223
    %v256 = vunpack.c.l.b16 %v224
    %v257 = vunpack.c.l.b16 %v225
    %v258 = vunpack.c.l.b16 %v226
    %v259 = vunpack.c.l.b16 %v227
    %v260 = vunpack.c.l.b16 %v228
    %v261 = vunpack.c.l.b16 %v229
    %v262 = vunpack.c.l.b16 %v230
    %v263 = vunpack.c.l.b16 %v231
    %v264 = vpack.c.b16 %v249, %v248
    %v265 = vpack.c.b16 %v251, %v250
    %v266 = vpack.c.b16 %v253, %v252
    %v267 = vpack.c.b16 %v255, %v254
    %v268 = vpack.c.b16 %v257, %v256
    %v269 = vpack.c.b16 %v259, %v258
    %v270 = vpack.c.b16 %v261, %v260
    %v271 = vpack.c.b16 %v263, %v262
    %280 = vmatprep.subr.bf16.mxu0 0
    %281 = vmatpush1.bf16.msra.mxu0 %v264
    %282 = vmatprep.subr.bf16.mxu0 0
    %283 = vmatpush1.bf16.msra.mxu0 %v265
    %284 = vmatprep.subr.bf16.mxu0 0
    %285 = vmatpush1.bf16.msra.mxu0 %v266
    %286 = vmatprep.subr.bf16.mxu0 0
    %287 = vmatpush1.bf16.msra.mxu0 %v267
    %288 = vmatprep.subr.bf16.mxu0 0
    %289 = vmatpush1.bf16.msra.mxu0 %v268
    %290 = vmatprep.subr.bf16.mxu0 0
    %291 = vmatpush1.bf16.msra.mxu0 %v269
    %292 = vmatprep.subr.bf16.mxu0 0
    %293 = vmatpush1.bf16.msra.mxu0 %v270
    %294 = vmatprep.subr.bf16.mxu0 0
    %295 = vmatpush1.bf16.msra.mxu0 %v271
    %296 = vmatprep.subr.bf16.mxu0 0
    %297 = vmatpush1.bf16.msra.mxu0 0
    %298 = vmatprep.subr.bf16.mxu0 0
    %299 = vmatpush1.bf16.msra.mxu0 0
    %300 = vmatprep.subr.bf16.mxu0 0
    %301 = vmatpush1.bf16.msra.mxu0 0
    %302 = vmatprep.subr.bf16.mxu0 0
    %303 = vmatpush1.bf16.msra.mxu0 0
    %304 = vmatprep.subr.bf16.mxu0 0
    %305 = vmatpush1.bf16.msra.mxu0 0
    %306 = vmatprep.subr.bf16.mxu0 0
    %307 = vmatpush1.bf16.msra.mxu0 0
    %308 = vmatprep.subr.bf16.mxu0 0
    %309 = vmatpush1.bf16.msra.mxu0 0
    %310 = vmatprep.subr.bf16.mxu0 0
    %311 = vmatpush1.bf16.msra.mxu0 0
    %312 = vmatprep.mubr.bf16.mxu0 0
    %313 = vmatmul.mubr.bf16.gmra.mrb[0].mxu0 %v213
    %v314 = vpop.f32.mrb[0].mxu0
    %v315 = vadd.f32 0.0, %v314
    %v316 = vpop.f32.mrb[0].mxu0
    %v317 = vpop.f32.mrb[0].mxu0
    %v318 = vadd.f32 0.0, %v317
    %v319 = vpop.f32.mrb[0].mxu0
    %320 = vmatprep.mubr.bf16.mxu0 0
    %321 = vmatmul.mubr.bf16.gmra.mrb[0].mxu0 %v214
    %v322 = vpop.f32.mrb[0].mxu0
    %v323 = vadd.f32 0.0, %v322
    %v324 = vpop.f32.mrb[0].mxu0
    %v325 = vpop.f32.mrb[0].mxu0
    %v326 = vadd.f32 0.0, %v325
    %v327 = vpop.f32.mrb[0].mxu0
    %328 = vdwg.mxu0
    %v329 = vadd.f32 %v315, %v318
    %v330 = vadd.f32 %v329, %v323
    %v331 = vadd.f32 %v330, %v326
    %v332 = vrot.slane %v331, 4
    %v333 = vadd.f32 %v331, %v332
    %v334 = vrot.slane %v333, 2
    %v335 = vadd.f32 %v333, %v334
    %v336 = vrot.slane %v335, 1
    %v337 = vadd.f32 %v335, %v336
    %v338 = vmul.f32 %v337, 0.03125
    %v339 = vmul.f32 %v315, %v315
    %v340 = vmul.f32 %v318, %v318
    %v341 = vmul.f32 %v323, %v323
    %v342 = vmul.f32 %v326, %v326
    %v343 = vadd.f32 %v339, %v340
    %v344 = vadd.f32 %v343, %v341
    %v345 = vadd.f32 %v344, %v342
    %v346 = vrot.slane %v345, 4
    %v347 = vadd.f32 %v345, %v346
    %v348 = vrot.slane %v347, 2
    %v349 = vadd.f32 %v347, %v348
    %v350 = vrot.slane %v349, 1
    %v351 = vadd.f32 %v349, %v350
    %v352 = vmul.f32 %v351, 0.03125
    %v353 = vmul.f32 %v338, %v338
    %v354 = vsub.f32 %v352, %v353
    %v355 = vadd.f32 %v354, 1e-05
    %v356 = vrsqrt.pop %v355
    %v357 = vmul.f32 %v33, %v356
    %v358 = vmul.f32 %v338, %v357
    %v360 = vrot.slane %v358, 7
    %v362 = vsub.f32 %v33, %v360
    %v363 = vlaneseq
    %v364 = vshrl.u32 %v363, 7
    %v365 = vsub.s32 2, %v364
    %v366 = vrot.slane %v357, %v365
    %v367 = vmul.f32 %v315, %v366
    %v368 = vmul.f32 %v318, %v366
    %v369 = vmul.f32 %v323, %v366
    %v370 = vmul.f32 %v326, %v366
    %v371 = vlaneseq
    %v372 = vshrl.u32 %v371, 7
    %v373 = vsub.s32 3, %v372
    %v374 = vrot.slane %v362, %v373
    %v375 = vadd.f32 %v367, %v374
    %v376 = vadd.f32 %v368, %v374
    %v377 = vadd.f32 %v369, %v374
    %v378 = vadd.f32 %v370, %v374
    %v379 = vmax.f32 %v375, 0.0
    %v380 = vmax.f32 %v376, 0.0
    %v381 = vmax.f32 %v377, 0.0
    %v382 = vmax.f32 %v378, 0.0
    %383 = vst [vmem:[%s3 + $0x8] sm:$0xff] %v379
    %384 = vst [vmem:[%s3 + $0x18] sm:$0xff] %v380
    %385 = vst [vmem:[%s3 + $0x28] sm:$0xff] %v381
    %386 = vst [vmem:[%s3 + $0x38] sm:$0xff] %v382
    %v387 = vpack.c.bf16 %v380, %v379
    %v388 = vpack.c.bf16 %v382, %v381
    %s389 = scalar_lea.vmem [#allocation2], 128
    %v390 = vld [vmem:[%s389] sm:$0xf]
    %v391 = vld [vmem:[%s389 + $0x4] sm:$0xf]
    %v392 = vld [vmem:[%s389 + $0x8] sm:$0xf]
    %v393 = vld [vmem:[%s389 + $0xc] sm:$0xf]
    %v394 = vld [vmem:[%s389 + $0x10] sm:$0xf]
    %v395 = vld [vmem:[%s389 + $0x14] sm:$0xf]
    %v396 = vld [vmem:[%s389 + $0x18] sm:$0xf]
    %v397 = vld [vmem:[%s389 + $0x1c] sm:$0xf]
    %v398 = vld [vmem:[%s389 + $0x20] sm:$0xf]
    %v399 = vld [vmem:[%s389 + $0x24] sm:$0xf]
    %v400 = vld [vmem:[%s389 + $0x28] sm:$0xf]
    %v401 = vld [vmem:[%s389 + $0x2c] sm:$0xf]
    %v402 = vld [vmem:[%s389 + $0x30] sm:$0xf]
    %v403 = vld [vmem:[%s389 + $0x34] sm:$0xf]
    %v404 = vld [vmem:[%s389 + $0x38] sm:$0xf]
    %v405 = vld [vmem:[%s389 + $0x3c] sm:$0xf]
    %v422 = vunpack.c.l.b16 %v390
    %v423 = vunpack.c.l.b16 %v391
    %v424 = vunpack.c.l.b16 %v392
    %v425 = vunpack.c.l.b16 %v393
    %v426 = vunpack.c.l.b16 %v394
    %v427 = vunpack.c.l.b16 %v395
    %v428 = vunpack.c.l.b16 %v396
    %v429 = vunpack.c.l.b16 %v397
    %v430 = vunpack.c.l.b16 %v398
    %v431 = vunpack.c.l.b16 %v399
    %v432 = vunpack.c.l.b16 %v400
    %v433 = vunpack.c.l.b16 %v401
    %v434 = vunpack.c.l.b16 %v402
    %v435 = vunpack.c.l.b16 %v403
    %v436 = vunpack.c.l.b16 %v404
    %v437 = vunpack.c.l.b16 %v405
    %v438 = vpack.c.b16 %v423, %v422
    %v439 = vpack.c.b16 %v425, %v424
    %v440 = vpack.c.b16 %v427, %v426
    %v441 = vpack.c.b16 %v429, %v428
    %v442 = vpack.c.b16 %v431, %v430
    %v443 = vpack.c.b16 %v433, %v432
    %v444 = vpack.c.b16 %v435, %v434
    %v445 = vpack.c.b16 %v437, %v436
    %454 = vmatprep.subr.bf16.mxu0 0
    %455 = vmatpush1.bf16.msra.mxu0 %v438
    %456 = vmatprep.subr.bf16.mxu0 0
    %457 = vmatpush1.bf16.msra.mxu0 %v439
    %458 = vmatprep.subr.bf16.mxu0 0
    %459 = vmatpush1.bf16.msra.mxu0 %v440
    %460 = vmatprep.subr.bf16.mxu0 0
    %461 = vmatpush1.bf16.msra.mxu0 %v441
    %462 = vmatprep.subr.bf16.mxu0 0
    %463 = vmatpush1.bf16.msra.mxu0 %v442
    %464 = vmatprep.subr.bf16.mxu0 0
    %465 = vmatpush1.bf16.msra.mxu0 %v443
    %466 = vmatprep.subr.bf16.mxu0 0
    %467 = vmatpush1.bf16.msra.mxu0 %v444
    %468 = vmatprep.subr.bf16.mxu0 0
    %469 = vmatpush1.bf16.msra.mxu0 %v445
    %470 = vmatprep.subr.bf16.mxu0 0
    %471 = vmatpush1.bf16.msra.mxu0 0
    %472 = vmatprep.subr.bf16.mxu0 0
    %473 = vmatpush1.bf16.msra.mxu0 0
    %474 = vmatprep.subr.bf16.mxu0 0
    %475 = vmatpush1.bf16.msra.mxu0 0
    %476 = vmatprep.subr.bf16.mxu0 0
    %477 = vmatpush1.bf16.msra.mxu0 0
    %478 = vmatprep.subr.bf16.mxu0 0
    %479 = vmatpush1.bf16.msra.mxu0 0
    %480 = vmatprep.subr.bf16.mxu0 0
    %481 = vmatpush1.bf16.msra.mxu0 0
    %482 = vmatprep.subr.bf16.mxu0 0
    %483 = vmatpush1.bf16.msra.mxu0 0
    %484 = vmatprep.subr.bf16.mxu0 0
    %485 = vmatpush1.bf16.msra.mxu0 0
    %486 = vmatprep.mubr.bf16.mxu0 0
    %487 = vmatmul.mubr.bf16.gmra.mrb[0].mxu0 %v387
    %v488 = vpop.f32.mrb[0].mxu0
    %v489 = vadd.f32 0.0, %v488
    %v490 = vpop.f32.mrb[0].mxu0
    %v491 = vpop.f32.mrb[0].mxu0
    %v492 = vadd.f32 0.0, %v491
    %v493 = vpop.f32.mrb[0].mxu0
    %494 = vmatprep.mubr.bf16.mxu0 0
    %495 = vmatmul.mubr.bf16.gmra.mrb[0].mxu0 %v388
    %v496 = vpop.f32.mrb[0].mxu0
    %v497 = vadd.f32 0.0, %v496
    %v498 = vpop.f32.mrb[0].mxu0
    %v499 = vpop.f32.mrb[0].mxu0
    %v500 = vadd.f32 0.0, %v499
    %v501 = vpop.f32.mrb[0].mxu0
    %502 = vdwg.mxu0
    %v503 = vadd.f32 %v489, %v492
    %v504 = vadd.f32 %v503, %v497
    %v505 = vadd.f32 %v504, %v500
    %v506 = vrot.slane %v505, 4
    %v507 = vadd.f32 %v505, %v506
    %v508 = vrot.slane %v507, 2
    %v509 = vadd.f32 %v507, %v508
    %v510 = vrot.slane %v509, 1
    %v511 = vadd.f32 %v509, %v510
    %v512 = vmul.f32 %v511, 0.03125
    %v513 = vmul.f32 %v489, %v489
    %v514 = vmul.f32 %v492, %v492
    %v515 = vmul.f32 %v497, %v497
    %v516 = vmul.f32 %v500, %v500
    %v517 = vadd.f32 %v513, %v514
    %v518 = vadd.f32 %v517, %v515
    %v519 = vadd.f32 %v518, %v516
    %v520 = vrot.slane %v519, 4
    %v521 = vadd.f32 %v519, %v520
    %v522 = vrot.slane %v521, 2
    %v523 = vadd.f32 %v521, %v522
    %v524 = vrot.slane %v523, 1
    %v525 = vadd.f32 %v523, %v524
    %v526 = vmul.f32 %v525, 0.03125
    %v527 = vmul.f32 %v512, %v512
    %v528 = vsub.f32 %v526, %v527
    %v529 = vadd.f32 %v528, 1e-05
    %v530 = vrsqrt.pop %v529
    %v531 = vmul.f32 %v33, %v530
    %v532 = vmul.f32 %v512, %v531
    %v534 = vrot.slane %v532, 7
    %v536 = vsub.f32 %v33, %v534
    %v537 = vlaneseq
    %v538 = vshrl.u32 %v537, 7
    %v539 = vsub.s32 4, %v538
    %v540 = vrot.slane %v531, %v539
    %v541 = vmul.f32 %v489, %v540
    %v542 = vmul.f32 %v492, %v540
    %v543 = vmul.f32 %v497, %v540
    %v544 = vmul.f32 %v500, %v540
    %v545 = vlaneseq
    %v546 = vshrl.u32 %v545, 7
    %v547 = vsub.s32 5, %v546
    %v548 = vrot.slane %v536, %v547
    %v549 = vadd.f32 %v541, %v548
    %v550 = vadd.f32 %v542, %v548
    %v551 = vadd.f32 %v543, %v548
    %v552 = vadd.f32 %v544, %v548
    %v553 = vmax.f32 %v549, 0.0
    %v554 = vmax.f32 %v550, 0.0
    %v555 = vmax.f32 %v551, 0.0
    %v556 = vmax.f32 %v552, 0.0
    %v557 = vpack.c.bf16 %v554, %v553
    %v558 = vpack.c.bf16 %v556, %v555
    %s559 = scalar_lea.vmem [#allocation2], 192
    %v560 = vld [vmem:[%s559] sm:$0xf]
    %v561 = vld [vmem:[%s559 + $0x4] sm:$0xf]
    %v562 = vld [vmem:[%s559 + $0x8] sm:$0xf]
    %v563 = vld [vmem:[%s559 + $0xc] sm:$0xf]
    %v564 = vld [vmem:[%s559 + $0x10] sm:$0xf]
    %v565 = vld [vmem:[%s559 + $0x14] sm:$0xf]
    %v566 = vld [vmem:[%s559 + $0x18] sm:$0xf]
    %v567 = vld [vmem:[%s559 + $0x1c] sm:$0xf]
    %v568 = vld [vmem:[%s559 + $0x20] sm:$0xf]
    %v569 = vld [vmem:[%s559 + $0x24] sm:$0xf]
    %v570 = vld [vmem:[%s559 + $0x28] sm:$0xf]
    %v571 = vld [vmem:[%s559 + $0x2c] sm:$0xf]
    %v572 = vld [vmem:[%s559 + $0x30] sm:$0xf]
    %v573 = vld [vmem:[%s559 + $0x34] sm:$0xf]
    %v574 = vld [vmem:[%s559 + $0x38] sm:$0xf]
    %v575 = vld [vmem:[%s559 + $0x3c] sm:$0xf]
    %v576 = vlaneseq
    %v577 = vshrl.u32 %v576, 7
    %v578 = vsub.s32 6, %v577
    %v579 = vrot.slane %v33, %v578
    %v596 = vunpack.c.l.b16 %v560
    %v597 = vunpack.c.l.b16 %v561
    %v598 = vunpack.c.l.b16 %v562
    %v599 = vunpack.c.l.b16 %v563
    %v600 = vunpack.c.l.b16 %v564
    %v601 = vunpack.c.l.b16 %v565
    %v602 = vunpack.c.l.b16 %v566
    %v603 = vunpack.c.l.b16 %v567
    %v604 = vunpack.c.l.b16 %v568
    %v605 = vunpack.c.l.b16 %v569
    %v606 = vunpack.c.l.b16 %v570
    %v607 = vunpack.c.l.b16 %v571
    %v608 = vunpack.c.l.b16 %v572
    %v609 = vunpack.c.l.b16 %v573
    %v610 = vunpack.c.l.b16 %v574
    %v611 = vunpack.c.l.b16 %v575
    %v612 = vpack.c.b16 %v597, %v596
    %v613 = vpack.c.b16 %v599, %v598
    %v614 = vpack.c.b16 %v601, %v600
    %v615 = vpack.c.b16 %v603, %v602
    %v616 = vpack.c.b16 %v605, %v604
    %v617 = vpack.c.b16 %v607, %v606
    %v618 = vpack.c.b16 %v609, %v608
    %v619 = vpack.c.b16 %v611, %v610
    %628 = vmatprep.subr.bf16.mxu0 0
    %629 = vmatpush1.bf16.msra.mxu0 %v612
    %630 = vmatprep.subr.bf16.mxu0 0
    %631 = vmatpush1.bf16.msra.mxu0 %v613
    %632 = vmatprep.subr.bf16.mxu0 0
    %633 = vmatpush1.bf16.msra.mxu0 %v614
    %634 = vmatprep.subr.bf16.mxu0 0
    %635 = vmatpush1.bf16.msra.mxu0 %v615
    %636 = vmatprep.subr.bf16.mxu0 0
    %637 = vmatpush1.bf16.msra.mxu0 %v616
    %638 = vmatprep.subr.bf16.mxu0 0
    %639 = vmatpush1.bf16.msra.mxu0 %v617
    %640 = vmatprep.subr.bf16.mxu0 0
    %641 = vmatpush1.bf16.msra.mxu0 %v618
    %642 = vmatprep.subr.bf16.mxu0 0
    %643 = vmatpush1.bf16.msra.mxu0 %v619
    %644 = vmatprep.subr.bf16.mxu0 0
    %645 = vmatpush1.bf16.msra.mxu0 0
    %646 = vmatprep.subr.bf16.mxu0 0
    %647 = vmatpush1.bf16.msra.mxu0 0
    %648 = vmatprep.subr.bf16.mxu0 0
    %649 = vmatpush1.bf16.msra.mxu0 0
    %650 = vmatprep.subr.bf16.mxu0 0
    %651 = vmatpush1.bf16.msra.mxu0 0
    %652 = vmatprep.subr.bf16.mxu0 0
    %653 = vmatpush1.bf16.msra.mxu0 0
    %654 = vmatprep.subr.bf16.mxu0 0
    %655 = vmatpush1.bf16.msra.mxu0 0
    %656 = vmatprep.subr.bf16.mxu0 0
    %657 = vmatpush1.bf16.msra.mxu0 0
    %658 = vmatprep.subr.bf16.mxu0 0
    %659 = vmatpush1.bf16.msra.mxu0 0
    %660 = vmatprep.mubr.bf16.mxu0 0
    %661 = vmatmul.mubr.bf16.gmra.mrb[0].mxu0 %v557
    %v662 = vpop.f32.mrb[0].mxu0
    %v663 = vadd.f32 %v579, %v662
    %v664 = vpop.f32.mrb[0].mxu0
    %v665 = vpop.f32.mrb[0].mxu0
    %v666 = vadd.f32 %v579, %v665
    %v667 = vpop.f32.mrb[0].mxu0
    %668 = vmatprep.mubr.bf16.mxu0 0
    %669 = vmatmul.mubr.bf16.gmra.mrb[0].mxu0 %v558
    %v670 = vpop.f32.mrb[0].mxu0
    %v671 = vadd.f32 %v579, %v670
    %v672 = vpop.f32.mrb[0].mxu0
    %v673 = vpop.f32.mrb[0].mxu0
    %v674 = vadd.f32 %v579, %v673
    %v675 = vpop.f32.mrb[0].mxu0
    %676 = vdwg.mxu0
    %677 = vst [vmem:[%s3] sm:$0xff] %v663
    %678 = vst [vmem:[%s3 + $0x10] sm:$0xff] %v666
    %679 = vst [vmem:[%s3 + $0x20] sm:$0xff] %v671
    %680 = vst [vmem:[%s3 + $0x30] sm:$0xff] %v674
    // Predicated region
    $region18: #{ae_forward.1} parent=1 // pred_check
      _
    $region19: #{ae_forward.1} parent=1 // pred_check_branch
      %682 = sbr.rel (0) target = $region21
    $region20: #{ae_forward.1} parent=1 // pred_region
      _
    $region21: #{ae_forward.1} parent=1 // pred_fallthru
      _
    // Predicated region
    $region22: #{ae_forward.1} parent=1 // pred_check
      _
    $region23: #{ae_forward.1} parent=1 // pred_check_branch
      %684 = sbr.rel (0) target = $region25
    $region24: #{ae_forward.1} parent=1 // pred_region
      _
    $region25: #{ae_forward.1} parent=1 // pred_fallthru
      _
    %685 = vsyncpa [#allocation3], 1

</llo_original>
